<compile_context>
chip_gen: v7x
topology: tpu7x:2x2x1
jax: 0.10.0
libtpu: 0.0.40
codegen_flags: <defaults>
</compile_context>

<pallas_src>
import jax
import jax.numpy as jnp
from jax.experimental import pallas as pl
from jax.experimental.pallas import tpu as pltpu


def _round_up(x, m):
    return (x + m - 1) // m * m


def _shared_expert_kernel(x_ref, w13_ref, u1_ref, u3_ref, w2_ref, v2_ref,
                          v13_ref, u2_ref, o_ref, acc_ref, hv_ref, xv_ref):
    """One (token_tile, i_tile) step of the fused shared-expert + low-rank-delta MLP.

    Grid = (token_tiles, i_tiles).  The I axis (j) is the inner reduction axis: gate/up/h are
    produced per I-slice, the down projections are accumulated in f32 scratch, and the output
    tile is written on the last I-slice.
    """
    j = pl.program_id(1)
    n_j = pl.num_programs(1)
    t_i = w2_ref.shape[0]          # intermediate tile width
    r = u1_ref.shape[0]            # (padded) delta low rank

    x = x_ref[...]                                                  # (tm, H) bf16

    @pl.when(j == 0)
    def _init():
        acc_ref[...] = jnp.zeros_like(acc_ref)
        hv_ref[...] = jnp.zeros_like(hv_ref)
        # Low-rank x-projection (v1|v3 fused -> N = 2R), computed once per token tile since it
        # is invariant over the I axis.  bf16 scratch matches the bf16 v-linear output dtype.
        xv_ref[...] = jnp.dot(x, v13_ref[...],
                              preferred_element_type=jnp.float32).astype(xv_ref.dtype)

    # Base gate/up for this I-slice: one wide matmul (N = 2*t_i), f32 accumulation.
    gu = jnp.dot(x, w13_ref[...], preferred_element_type=jnp.float32)   # (tm, 2*t_i)

    xv = xv_ref[...]                                                # (tm, 2R) bf16
    gate = gu[:, :t_i] + jnp.dot(xv[:, :r], u1_ref[...],
                                 preferred_element_type=jnp.float32)
    up = gu[:, t_i:] + jnp.dot(xv[:, r:], u3_ref[...],
                               preferred_element_type=jnp.float32)

    # silu(gate) * up in f32, single cast to bf16 before the down projections.
    h = (gate * jax.nn.sigmoid(gate) * up).astype(jnp.bfloat16)     # (tm, t_i)

    acc_ref[...] += jnp.dot(h, w2_ref[...], preferred_element_type=jnp.float32)
    hv_ref[...] += jnp.dot(h, v2_ref[...], preferred_element_type=jnp.float32)

    @pl.when(j == n_j - 1)
    def _finalize():
        hv = hv_ref[...].astype(jnp.bfloat16)                       # bf16 v2(h) output
        out = acc_ref[...] + jnp.dot(hv, u2_ref[...],
                                     preferred_element_type=jnp.float32)
        o_ref[...] = out.astype(o_ref.dtype)


def shared_expert_with_delta(hidden_states, params, *, token_tile=256, i_tile=256):
    """hidden_states: (B, S, H) bf16.  params: dict of (in, out)-layout bf16 matrices."""
    B, S, H = hidden_states.shape
    T = B * S
    dtype = hidden_states.dtype

    w1, w3, w2 = params["w1"], params["w3"], params["w2"]       # (H,I), (H,I), (I,H)
    v1, u1 = params["v1"], params["u1"]                         # (H,R), (R,I)
    v2, u2 = params["v2"], params["u2"]                         # (I,R), (R,H)
    v3, u3 = params["v3"], params["u3"]                         # (H,R), (R,I)
    I = w1.shape[1]
    R = v1.shape[1]

    # ---- alignment / tiling (padding with zeros is exact for this MLP) ----
    r_pad = _round_up(R, 128)                  # lane-aligned low rank
    t_i = min(i_tile, _round_up(I, 128))       # intermediate (N / K) tile
    i_pad = _round_up(I, t_i)
    n_i = i_pad // t_i
    tm = token_tile if T >= token_tile else _round_up(T, 16)
    t_pad = _round_up(T, tm)
    n_t = t_pad // tm

    def pad2(a, rows, cols):
        pr, pc = rows - a.shape[0], cols - a.shape[1]
        return jnp.pad(a, ((0, pr), (0, pc))) if (pr or pc) else a

    x = hidden_states.reshape(T, H)
    if t_pad != T:
        x = jnp.pad(x, ((0, t_pad - T), (0, 0)))

    # Fused gate|up weight, sliced along I: (n_i, H, 2*t_i)
    w1p = pad2(w1, H, i_pad).reshape(H, n_i, t_i)
    w3p = pad2(w3, H, i_pad).reshape(H, n_i, t_i)
    w13 = jnp.transpose(jnp.concatenate([w1p, w3p], axis=-1), (1, 0, 2))

    # Delta up-projections sliced along I: (n_i, r_pad, t_i)
    u1p = jnp.transpose(pad2(u1, r_pad, i_pad).reshape(r_pad, n_i, t_i), (1, 0, 2))
    u3p = jnp.transpose(pad2(u3, r_pad, i_pad).reshape(r_pad, n_i, t_i), (1, 0, 2))

    # Down projections sliced along I (their K axis): (n_i, t_i, H) / (n_i, t_i, r_pad)
    w2p = pad2(w2, i_pad, H).reshape(n_i, t_i, H)
    v2p = pad2(v2, i_pad, r_pad).reshape(n_i, t_i, r_pad)

    # Small, I-invariant operands kept fully resident.
    # TODO(synk): at very large delta ranks these would also need streaming over an R grid axis.
    v13 = jnp.concatenate([pad2(v1, H, r_pad), pad2(v3, H, r_pad)], axis=-1)   # (H, 2*r_pad)
    u2p = pad2(u2, r_pad, H)                                                   # (r_pad, H)

    cost = pl.CostEstimate(
        flops=6 * T * (H * I + H * R + R * I),
        transcendentals=T * I,
        bytes_accessed=2 * (3 * (H * I + H * R + R * I) + 2 * T * H),
    )

    out = pl.pallas_call(
        _shared_expert_kernel,
        out_shape=jax.ShapeDtypeStruct((t_pad, H), dtype),
        grid_spec=pltpu.PrefetchScalarGridSpec(
            num_scalar_prefetch=0,
            grid=(n_t, n_i),
            in_specs=[
                pl.BlockSpec((tm, H), lambda i, j: (i, 0)),                 # x tile
                pl.BlockSpec((None, H, 2 * t_i), lambda i, j: (j, 0, 0)),   # [w1|w3] I-slice
                pl.BlockSpec((None, r_pad, t_i), lambda i, j: (j, 0, 0)),   # u1 I-slice
                pl.BlockSpec((None, r_pad, t_i), lambda i, j: (j, 0, 0)),   # u3 I-slice
                pl.BlockSpec((None, t_i, H), lambda i, j: (j, 0, 0)),       # w2 I-slice
                pl.BlockSpec((None, t_i, r_pad), lambda i, j: (j, 0, 0)),   # v2 I-slice
                pl.BlockSpec((H, 2 * r_pad), lambda i, j: (0, 0)),          # [v1|v3] (resident)
                pl.BlockSpec((r_pad, H), lambda i, j: (0, 0)),              # u2 (resident)
            ],
            out_specs=pl.BlockSpec((tm, H), lambda i, j: (i, 0)),
            scratch_shapes=[
                pltpu.VMEM((tm, H), jnp.float32),           # down-proj accumulator
                pltpu.VMEM((tm, r_pad), jnp.float32),       # h @ v2 accumulator
                pltpu.VMEM((tm, 2 * r_pad), jnp.bfloat16),  # x @ [v1|v3]
            ],
        ),
        compiler_params=pltpu.CompilerParams(
            dimension_semantics=("parallel", "arbitrary"),
            vmem_limit_bytes=64 * 1024 * 1024,
        ),
        cost_estimate=cost,
    )(x, w13, u1p, u3p, w2p, v2p, v13, u2p)

    return out[:T].reshape(B, S, H)


def _reference(hidden_states, params):
    """Plain-JAX reference mirroring the PyTorch forward (bf16 linears)."""
    x = hidden_states
    bf = jnp.bfloat16
    lin = lambda a, w: jnp.dot(a, w, preferred_element_type=jnp.float32).astype(bf)
    up = lin(x, params["w3"]) + lin(lin(x, params["v3"]), params["u3"])
    gate = lin(x, params["w1"]) + lin(lin(x, params["v1"]), params["u1"])
    g32 = gate.astype(jnp.float32)
    h = (g32 * jax.nn.sigmoid(g32)).astype(bf) * up
    return lin(h, params["w2"]) + lin(lin(h, params["v2"]), params["u2"])


def make_params(key, hidden_dim, intermediate_dim):
    """Deterministic synthetic parameters (shapes from the module's __init__), stored (in, out)."""
    delta_low_rank = int(intermediate_dim * hidden_dim * 1 / (intermediate_dim + hidden_dim))
    ks = jax.random.split(key, 9)
    bf = jnp.bfloat16

    def mk(k, out_f, in_f):
        # nn.Linear weight is (out_f, in_f); we keep the transposed (in_f, out_f) layout.
        w = jax.random.normal(k, (out_f, in_f), dtype=jnp.float32) * 0.02
        return jnp.transpose(w).astype(bf)

    H, I, R = hidden_dim, intermediate_dim, delta_low_rank
    return {
        "w1": mk(ks[0], I, H),
        "w2": mk(ks[1], H, I),
        "w3": mk(ks[2], I, H),
        "u1": mk(ks[3], I, R),
        "v1": mk(ks[4], R, H),
        "u2": mk(ks[5], H, R),
        "v2": mk(ks[6], R, I),
        "u3": mk(ks[7], I, R),
        "v3": mk(ks[8], R, H),
    }, R


if __name__ == "__main__":
    batch, seq = 2, 8
    hidden_dim, intermediate_dim = 64, 192   # -> delta_low_rank = 48

    key = jax.random.PRNGKey(0)
    kp, kx = jax.random.split(key)
    params, rank = make_params(kp, hidden_dim, intermediate_dim)

    x = (jax.random.normal(kx, (batch, seq, hidden_dim), dtype=jnp.float32)
         .astype(jnp.bfloat16))

    out = shared_expert_with_delta(x, params)
    out = jax.block_until_ready(out)

    ref = _reference(x.reshape(batch * seq, hidden_dim), params).reshape(batch, seq, hidden_dim)
    assert out.shape == (batch, seq, hidden_dim) and out.dtype == jnp.bfloat16
    assert jnp.allclose(out.astype(jnp.float32), ref.astype(jnp.float32),
                        atol=2e-2, rtol=2e-2)

    print("KERNEL_OK")
</pallas_src>

<mosaic_0001>
module attributes {stable_mosaic.version = 11 : i64} {
  func.func @_shared_expert_kernel(%arg0: i32, %arg1: i32, %arg2: memref<16x64xbf16, #tpu.memory_space<vmem>>, %arg3: memref<1x64x512xbf16, #tpu.memory_space<vmem>>, %arg4: memref<1x128x256xbf16, #tpu.memory_space<vmem>>, %arg5: memref<1x128x256xbf16, #tpu.memory_space<vmem>>, %arg6: memref<1x256x64xbf16, #tpu.memory_space<vmem>>, %arg7: memref<1x256x128xbf16, #tpu.memory_space<vmem>>, %arg8: memref<64x256xbf16, #tpu.memory_space<vmem>>, %arg9: memref<128x64xbf16, #tpu.memory_space<vmem>>, %arg10: memref<16x64xbf16, #tpu.memory_space<vmem>>, %arg11: memref<16x64xf32, #tpu.memory_space<vmem>>, %arg12: memref<16x128xf32, #tpu.memory_space<vmem>>, %arg13: memref<16x256xbf16, #tpu.memory_space<vmem>>) attributes {dimension_semantics = [#tpu.dimension_semantics<parallel>, #tpu.dimension_semantics<arbitrary>], iteration_bounds = array<i64: 1, 1>, scalar_prefetch = 0 : i64, scratch_operands = 3 : i64, tpu.core_type = #tpu.core_type<tc>, window_params = [{transform_indices = @transform_0, window_bounds = array<i64: 16, 64>}, {transform_indices = @transform_1, window_bounds = array<i64: 1, 64, 512>}, {transform_indices = @transform_2, window_bounds = array<i64: 1, 128, 256>}, {transform_indices = @transform_3, window_bounds = array<i64: 1, 128, 256>}, {transform_indices = @transform_4, window_bounds = array<i64: 1, 256, 64>}, {transform_indices = @transform_5, window_bounds = array<i64: 1, 256, 128>}, {pipeline_mode = #tpu.pipeline_mode<synchronous>, transform_indices = @transform_6, window_bounds = array<i64: 64, 256>}, {pipeline_mode = #tpu.pipeline_mode<synchronous>, transform_indices = @transform_7, window_bounds = array<i64: 128, 64>}, {transform_indices = @transform_8, window_bounds = array<i64: 16, 64>}]} {
    %c0 = arith.constant 0 : index
    %c0_0 = arith.constant 0 : index
    %0 = vector.load %arg2[%c0, %c0_0] : memref<16x64xbf16, #tpu.memory_space<vmem>>, vector<16x64xbf16>
    %c0_i32 = arith.constant 0 : i32
    %1 = arith.cmpi eq, %arg1, %c0_i32 : i32
    %2 = arith.extui %1 : i1 to i32
    %c0_i32_1 = arith.constant 0 : i32
    %3 = arith.cmpi ne, %2, %c0_i32_1 : i32
    scf.if %3 {
      %cst_34 = arith.constant 0.000000e+00 : f32
      %43 = vector.broadcast %cst_34 : f32 to vector<16x64xf32>
      %c0_35 = arith.constant 0 : index
      %c0_36 = arith.constant 0 : index
      %44 = vector.load %arg11[%c0_35, %c0_36] : memref<16x64xf32, #tpu.memory_space<vmem>>, vector<16x64xf32>
      tpu.vector_store %arg11[%c0_35, %c0_36], %43 {strides = array<i32>} : memref<16x64xf32, #tpu.memory_space<vmem>>, vector<16x64xf32>,
      %cst_37 = arith.constant 0.000000e+00 : f32
      %45 = vector.broadcast %cst_37 : f32 to vector<16x128xf32>
      %c0_38 = arith.constant 0 : index
      %c0_39 = arith.constant 0 : index
      %46 = vector.load %arg12[%c0_38, %c0_39] : memref<16x128xf32, #tpu.memory_space<vmem>>, vector<16x128xf32>
      tpu.vector_store %arg12[%c0_38, %c0_39], %45 {strides = array<i32>} : memref<16x128xf32, #tpu.memory_space<vmem>>, vector<16x128xf32>,
      %c0_40 = arith.constant 0 : index
      %c0_41 = arith.constant 0 : index
      %47 = vector.load %arg8[%c0_40, %c0_41] : memref<64x256xbf16, #tpu.memory_space<vmem>>, vector<64x256xbf16>
      %cst_42 = arith.constant dense<0.000000e+00> : vector<16x256xf32>
      %48 = tpu.matmul %0, %47, %cst_42 {dimension_numbers = #tpu.dot_dimension_numbers<[1], [0], [0], [1], [0, 0, 1, 1], [], []>} : vector<16x64xbf16>, vector<64x256xbf16>, vector<16x256xf32> -> vector<16x256xf32>
      %49 = arith.truncf %48 : vector<16x256xf32> to vector<16x256xbf16>
      %c0_43 = arith.constant 0 : index
      %c0_44 = arith.constant 0 : index
      %50 = vector.load %arg13[%c0_43, %c0_44] : memref<16x256xbf16, #tpu.memory_space<vmem>>, vector<16x256xbf16>
      tpu.vector_store %arg13[%c0_43, %c0_44], %49 {strides = array<i32>} : memref<16x256xbf16, #tpu.memory_space<vmem>>, vector<16x256xbf16>,
    } else {
    }
    %c0_2 = arith.constant 0 : index
    %c0_3 = arith.constant 0 : index
    %c0_4 = arith.constant 0 : index
    %4 = vector.load %arg3[%c0_2, %c0_3, %c0_4] : memref<1x64x512xbf16, #tpu.memory_space<vmem>>, vector<1x64x512xbf16>
    %5 = vector.shape_cast %4 : vector<1x64x512xbf16> to vector<64x512xbf16>
    %cst = arith.constant dense<0.000000e+00> : vector<16x512xf32>
    %6 = tpu.matmul %0, %5, %cst {dimension_numbers = #tpu.dot_dimension_numbers<[1], [0], [0], [1], [0, 0, 1, 1], [], []>} : vector<16x64xbf16>, vector<64x512xbf16>, vector<16x512xf32> -> vector<16x512xf32>
    %c0_5 = arith.constant 0 : index
    %c0_6 = arith.constant 0 : index
    %7 = vector.load %arg13[%c0_5, %c0_6] : memref<16x256xbf16, #tpu.memory_space<vmem>>, vector<16x256xbf16>
    %8 = vector.extract_strided_slice %6 {offsets = [0, 0], sizes = [16, 256], strides = [1, 1]} : vector<16x512xf32> to vector<16x256xf32>
    %9 = vector.extract_strided_slice %7 {offsets = [0, 0], sizes = [16, 128], strides = [1, 1]} : vector<16x256xbf16> to vector<16x128xbf16>
    %c0_7 = arith.constant 0 : index
    %c0_8 = arith.constant 0 : index
    %c0_9 = arith.constant 0 : index
    %10 = vector.load %arg4[%c0_7, %c0_8, %c0_9] : memref<1x128x256xbf16, #tpu.memory_space<vmem>>, vector<1x128x256xbf16>
    %11 = vector.shape_cast %10 : vector<1x128x256xbf16> to vector<128x256xbf16>
    %cst_10 = arith.constant dense<0.000000e+00> : vector<16x256xf32>
    %12 = tpu.matmul %9, %11, %cst_10 {dimension_numbers = #tpu.dot_dimension_numbers<[1], [0], [0], [1], [0, 0, 1, 1], [], []>} : vector<16x128xbf16>, vector<128x256xbf16>, vector<16x256xf32> -> vector<16x256xf32>
    %13 = arith.addf %8, %12 : vector<16x256xf32>
    %14 = vector.extract_strided_slice %6 {offsets = [0, 256], sizes = [16, 256], strides = [1, 1]} : vector<16x512xf32> to vector<16x256xf32>
    %15 = vector.extract_strided_slice %7 {offsets = [0, 128], sizes = [16, 128], strides = [1, 1]} : vector<16x256xbf16> to vector<16x128xbf16>
    %c0_11 = arith.constant 0 : index
    %c0_12 = arith.constant 0 : index
    %c0_13 = arith.constant 0 : index
    %16 = vector.load %arg5[%c0_11, %c0_12, %c0_13] : memref<1x128x256xbf16, #tpu.memory_space<vmem>>, vector<1x128x256xbf16>
    %17 = vector.shape_cast %16 : vector<1x128x256xbf16> to vector<128x256xbf16>
    %cst_14 = arith.constant dense<0.000000e+00> : vector<16x256xf32>
    %18 = tpu.matmul %15, %17, %cst_14 {dimension_numbers = #tpu.dot_dimension_numbers<[1], [0], [0], [1], [0, 0, 1, 1], [], []>} : vector<16x128xbf16>, vector<128x256xbf16>, vector<16x256xf32> -> vector<16x256xf32>
    %19 = arith.addf %14, %18 : vector<16x256xf32>
    %20 = arith.negf %13 : vector<16x256xf32>
    %21 = math.exp %20 : vector<16x256xf32>
    %cst_15 = arith.constant 1.000000e+00 : f32
    %22 = vector.broadcast %cst_15 : f32 to vector<16x256xf32>
    %23 = arith.addf %22, %21 : vector<16x256xf32>
    %24 = arith.divf %22, %23 : vector<16x256xf32>
    %25 = arith.mulf %13, %24 : vector<16x256xf32>
    %26 = arith.mulf %25, %19 : vector<16x256xf32>
    %27 = arith.truncf %26 : vector<16x256xf32> to vector<16x256xbf16>
    %c0_16 = arith.constant 0 : index
    %c0_17 = arith.constant 0 : index
    %28 = vector.load %arg11[%c0_16, %c0_17] : memref<16x64xf32, #tpu.memory_space<vmem>>, vector<16x64xf32>
    %c0_18 = arith.constant 0 : index
    %c0_19 = arith.constant 0 : index
    %c0_20 = arith.constant 0 : index
    %29 = vector.load %arg6[%c0_18, %c0_19, %c0_20] : memref<1x256x64xbf16, #tpu.memory_space<vmem>>, vector<1x256x64xbf16>
    %30 = vector.shape_cast %29 : vector<1x256x64xbf16> to vector<256x64xbf16>
    %cst_21 = arith.constant dense<0.000000e+00> : vector<16x64xf32>
    %31 = tpu.matmul %27, %30, %cst_21 {dimension_numbers = #tpu.dot_dimension_numbers<[1], [0], [0], [1], [0, 0, 1, 1], [], []>} : vector<16x256xbf16>, vector<256x64xbf16>, vector<16x64xf32> -> vector<16x64xf32>
    %32 = arith.addf %28, %31 : vector<16x64xf32>
    %c0_22 = arith.constant 0 : index
    %c0_23 = arith.constant 0 : index
    %33 = vector.load %arg11[%c0_22, %c0_23] : memref<16x64xf32, #tpu.memory_space<vmem>>, vector<16x64xf32>
    tpu.vector_store %arg11[%c0_22, %c0_23], %32 {strides = array<i32>} : memref<16x64xf32, #tpu.memory_space<vmem>>, vector<16x64xf32>,
    %c0_24 = arith.constant 0 : index
    %c0_25 = arith.constant 0 : index
    %34 = vector.load %arg12[%c0_24, %c0_25] : memref<16x128xf32, #tpu.memory_space<vmem>>, vector<16x128xf32>
    %c0_26 = arith.constant 0 : index
    %c0_27 = arith.constant 0 : index
    %c0_28 = arith.constant 0 : index
    %35 = vector.load %arg7[%c0_26, %c0_27, %c0_28] : memref<1x256x128xbf16, #tpu.memory_space<vmem>>, vector<1x256x128xbf16>
    %36 = vector.shape_cast %35 : vector<1x256x128xbf16> to vector<256x128xbf16>
    %cst_29 = arith.constant dense<0.000000e+00> : vector<16x128xf32>
    %37 = tpu.matmul %27, %36, %cst_29 {dimension_numbers = #tpu.dot_dimension_numbers<[1], [0], [0], [1], [0, 0, 1, 1], [], []>} : vector<16x256xbf16>, vector<256x128xbf16>, vector<16x128xf32> -> vector<16x128xf32>
    %38 = arith.addf %34, %37 : vector<16x128xf32>
    %c0_30 = arith.constant 0 : index
    %c0_31 = arith.constant 0 : index
    %39 = vector.load %arg12[%c0_30, %c0_31] : memref<16x128xf32, #tpu.memory_space<vmem>>, vector<16x128xf32>
    tpu.vector_store %arg12[%c0_30, %c0_31], %38 {strides = array<i32>} : memref<16x128xf32, #tpu.memory_space<vmem>>, vector<16x128xf32>,
    %c0_i32_32 = arith.constant 0 : i32
    %40 = arith.cmpi eq, %arg1, %c0_i32_32 : i32
    %41 = arith.extui %40 : i1 to i32
    %c0_i32_33 = arith.constant 0 : i32
    %42 = arith.cmpi ne, %41, %c0_i32_33 : i32
    scf.if %42 {
      %c0_34 = arith.constant 0 : index
      %c0_35 = arith.constant 0 : index
      %43 = vector.load %arg12[%c0_34, %c0_35] : memref<16x128xf32, #tpu.memory_space<vmem>>, vector<16x128xf32>
      %44 = arith.truncf %43 : vector<16x128xf32> to vector<16x128xbf16>
      %c0_36 = arith.constant 0 : index
      %c0_37 = arith.constant 0 : index
      %45 = vector.load %arg11[%c0_36, %c0_37] : memref<16x64xf32, #tpu.memory_space<vmem>>, vector<16x64xf32>
      %c0_38 = arith.constant 0 : index
      %c0_39 = arith.constant 0 : index
      %46 = vector.load %arg9[%c0_38, %c0_39] : memref<128x64xbf16, #tpu.memory_space<vmem>>, vector<128x64xbf16>
      %cst_40 = arith.constant dense<0.000000e+00> : vector<16x64xf32>
      %47 = tpu.matmul %44, %46, %cst_40 {dimension_numbers = #tpu.dot_dimension_numbers<[1], [0], [0], [1], [0, 0, 1, 1], [], []>} : vector<16x128xbf16>, vector<128x64xbf16>, vector<16x64xf32> -> vector<16x64xf32>
      %48 = arith.addf %45, %47 : vector<16x64xf32>
      %49 = arith.truncf %48 : vector<16x64xf32> to vector<16x64xbf16>
      %c0_41 = arith.constant 0 : index
      %c0_42 = arith.constant 0 : index
      %50 = vector.load %arg10[%c0_41, %c0_42] : memref<16x64xbf16, #tpu.memory_space<vmem>>, vector<16x64xbf16>
      tpu.vector_store %arg10[%c0_41, %c0_42], %49 {strides = array<i32>} : memref<16x64xbf16, #tpu.memory_space<vmem>>, vector<16x64xbf16>,
    } else {
    }
    return
  }
  func.func @transform_0(%arg0: i32, %arg1: i32) -> (i32, i32) {
    %c0_i32 = arith.constant 0 : i32
    %c0_i32_0 = arith.constant 0 : i32
    return %arg0, %c0_i32 : i32, i32
  }
  func.func @transform_1(%arg0: i32, %arg1: i32) -> (i32, i32, i32) {
    %c0_i32 = arith.constant 0 : i32
    %c0_i32_0 = arith.constant 0 : i32
    %c0_i32_1 = arith.constant 0 : i32
    return %arg1, %c0_i32, %c0_i32_0 : i32, i32, i32
  }
  func.func @transform_2(%arg0: i32, %arg1: i32) -> (i32, i32, i32) {
    %c0_i32 = arith.constant 0 : i32
    %c0_i32_0 = arith.constant 0 : i32
    %c0_i32_1 = arith.constant 0 : i32
    return %arg1, %c0_i32, %c0_i32_0 : i32, i32, i32
  }
  func.func @transform_3(%arg0: i32, %arg1: i32) -> (i32, i32, i32) {
    %c0_i32 = arith.constant 0 : i32
    %c0_i32_0 = arith.constant 0 : i32
    %c0_i32_1 = arith.constant 0 : i32
    return %arg1, %c0_i32, %c0_i32_0 : i32, i32, i32
  }
  func.func @transform_4(%arg0: i32, %arg1: i32) -> (i32, i32, i32) {
    %c0_i32 = arith.constant 0 : i32
    %c0_i32_0 = arith.constant 0 : i32
    %c0_i32_1 = arith.constant 0 : i32
    return %arg1, %c0_i32, %c0_i32_0 : i32, i32, i32
  }
  func.func @transform_5(%arg0: i32, %arg1: i32) -> (i32, i32, i32) {
    %c0_i32 = arith.constant 0 : i32
    %c0_i32_0 = arith.constant 0 : i32
    %c0_i32_1 = arith.constant 0 : i32
    return %arg1, %c0_i32, %c0_i32_0 : i32, i32, i32
  }
  func.func @transform_6(%arg0: i32, %arg1: i32) -> (i32, i32) {
    %c0_i32 = arith.constant 0 : i32
    %c0_i32_0 = arith.constant 0 : i32
    %c0_i32_1 = arith.constant 0 : i32
    return %c0_i32, %c0_i32_0 : i32, i32
  }
  func.func @transform_7(%arg0: i32, %arg1: i32) -> (i32, i32) {
    %c0_i32 = arith.constant 0 : i32
    %c0_i32_0 = arith.constant 0 : i32
    %c0_i32_1 = arith.constant 0 : i32
    return %c0_i32, %c0_i32_0 : i32, i32
  }
  func.func @transform_8(%arg0: i32, %arg1: i32) -> (i32, i32) {
    %c0_i32 = arith.constant 0 : i32
    %c0_i32_0 = arith.constant 0 : i32
    return %arg0, %c0_i32 : i32, i32
  }
}

</mosaic_0001>

<llo_original>
// kernel: tpu_custom_call.1
$region0: #{tpu_custom_call.1}
  #allocation0 [shape = 'u32[]', space=smem, size = 0x4, offset = 0x4, fixed_abs, tag = 'smem constant byte address 0x4 - core index']
  #allocation1 [shape = 'u32[144,128]{1,0:T(1,128)}', space=vmem, size = 0x12000, scoped, tag = 'internal scratch']
  #allocation2 [shape = 'f32[16,64]{1,0:T(8,128)}', space=vmem, size = 0x2000, scoped, tag = 'scratch operand']
  #allocation3 [shape = 'f32[16,128]{1,0:T(8,128)}', space=vmem, size = 0x2000, scoped, tag = 'scratch operand']
  #allocation4 [shape = 'bf16[16,256]{1,0:T(16,128)(2,1)}', space=vmem, size = 0x2000, scoped, tag = 'scratch operand']
  %s0 = inlined_call_operand.hbm [shape: bf16[16,64], index: 0, kind: input, shape index: {}]
  %s1 = inlined_call_operand.hbm [shape: bf16[1,64,512], index: 1, kind: input, shape index: {}]
  %s2 = inlined_call_operand.hbm [shape: bf16[1,128,256], index: 2, kind: input, shape index: {}]
  %s3 = inlined_call_operand.hbm [shape: bf16[1,128,256], index: 3, kind: input, shape index: {}]
  %s4 = inlined_call_operand.hbm [shape: bf16[1,256,64], index: 4, kind: input, shape index: {}]
  %s5 = inlined_call_operand.hbm [shape: bf16[1,256,128], index: 5, kind: input, shape index: {}]
  %s6 = inlined_call_operand.hbm [shape: bf16[64,256], index: 6, kind: input, shape index: {}]
  %s7 = inlined_call_operand.hbm [shape: bf16[128,64], index: 7, kind: input, shape index: {}]
  %s8 = inlined_call_operand.hbm [shape: bf16[16,64], index: 8, kind: output, shape index: {}]
  %s9 = sld [smem:[#allocation0]]
  $region82: #{tpu_custom_call.1} parent=0
    _
  %s11 = ssub.s32 1, %s9
  %s12 = scalar_select 0, %s11, %s9
  $region1: #{tpu_custom_call.1} parent=0
    #allocation5 [shape = 'u8[4096]{0}', space=vmem, size = 0x1000, scoped, tag = 'input window, operand 0, single buffered']
    #allocation6 [shape = 's32[1]{0}', space=sflag, size = 0x4, scoped, tag = 'scoped memory for tpu_custom_call.1']
    #allocation7 [shape = 's32[1]{0}', space=sflag, size = 0x4, scoped, tag = 'scoped memory for tpu_custom_call.1']
    #allocation8 [shape = 'u8[65536]{0}', space=vmem, size = 0x10000, scoped, tag = 'input window, operand 1, single buffered']
    #allocation9 [shape = 's32[1]{0}', space=sflag, size = 0x4, scoped, tag = 'scoped memory for tpu_custom_call.1']
    #allocation10 [shape = 'u8[65536]{0}', space=vmem, size = 0x10000, scoped, tag = 'input window, operand 2, single buffered']
    #allocation11 [shape = 'u8[65536]{0}', space=vmem, size = 0x10000, scoped, tag = 'input window, operand 3, single buffered']
    #allocation12 [shape = 's32[1]{0}', space=sflag, size = 0x4, scoped, tag = 'scoped memory for tpu_custom_call.1']
    #allocation13 [shape = 'u8[65536]{0}', space=vmem, size = 0x10000, scoped, tag = 'input window, operand 4, single buffered']
    #allocation14 [shape = 'u8[65536]{0}', space=vmem, size = 0x10000, scoped, tag = 'input window, operand 5, single buffered']
    #allocation15 [shape = 's32[1]{0}', space=sflag, size = 0x4, scoped, tag = 'scoped memory for tpu_custom_call.1']
    #allocation16 [shape = 'u8[32768]{0}', space=vmem, size = 0x8000, scoped, tag = 'input window, operand 6, single buffered']
    #allocation17 [shape = 'u8[32768]{0}', space=vmem, size = 0x8000, scoped, tag = 'input window, operand 7, single buffered']
    #allocation18 [shape = 's32[1]{0}', space=sflag, size = 0x4, scoped, tag = 'scoped memory for tpu_custom_call.1']
    #allocation19 [shape = 'u8[4096]{0}', space=vmem, size = 0x1000, scoped, tag = 'output window, operand 0, single buffered']
    %13 = vsyncpa [#allocation6], 0
    %14 = vsyncpa [#allocation9], 0
    %15 = vsyncpa [#allocation12], 0
    %16 = vsyncpa [#allocation15], 0
    %17 = vsyncpa [#allocation18], 0
    %18 = vsyncpa [#allocation7], 0
    // Predicated region
    $region2: #{tpu_custom_call.1} parent=1 // pred_check
      _
    $region3: #{tpu_custom_call.1} parent=1 // pred_check_branch
      %20 = sbr.rel (0) target = $region5
    $region4: #{tpu_custom_call.1} parent=1 // pred_region
      %s22 = ssub.s32 128, 128
      %23 = vsyncadd [#allocation6], %s22
      %s24 = sshll.u32 [#allocation5], 4
      %s25 = int_to_ptr.vmem [resolvable:$true] %s24
      %30 = dma.hbm_to_vmem [thread:$0]  %s0, 128, %s25, [#allocation6], 64, 64, 4
    $region5: #{tpu_custom_call.1} parent=1 // pred_fallthru
      _
    // Predicated region
    $region6: #{tpu_custom_call.1} parent=1 // pred_check
      _
    $region7: #{tpu_custom_call.1} parent=1 // pred_check_branch
      %32 = sbr.rel (0) target = $region9
    $region8: #{tpu_custom_call.1} parent=1 // pred_region
      %s34 = ssub.s32 2048, 2048
      %35 = vsyncadd [#allocation9], %s34
      %s36 = sshll.u32 [#allocation8], 4
      %s37 = int_to_ptr.vmem [resolvable:$true] %s36
      %42 = dma.hbm_to_vmem [thread:$0]  %s1, 2048, %s37, [#allocation9], 256, 256, 16
    $region9: #{tpu_custom_call.1} parent=1 // pred_fallthru
      _
    // Predicated region
    $region10: #{tpu_custom_call.1} parent=1 // pred_check
      _
    $region11: #{tpu_custom_call.1} parent=1 // pred_check_branch
      %44 = sbr.rel (0) target = $region13
    $region12: #{tpu_custom_call.1} parent=1 // pred_region
      %s46 = ssub.s32 2048, 2048
      %47 = vsyncadd [#allocation9], %s46
      %s48 = sshll.u32 [#allocation10], 4
      %s49 = int_to_ptr.vmem [resolvable:$true] %s48
      %54 = dma.hbm_to_vmem [thread:$0]  %s2, 2048, %s49, [#allocation9], 128, 128, 8
    $region13: #{tpu_custom_call.1} parent=1 // pred_fallthru
      _
    // Predicated region
    $region14: #{tpu_custom_call.1} parent=1 // pred_check
      _
    $region15: #{tpu_custom_call.1} parent=1 // pred_check_branch
      %56 = sbr.rel (0) target = $region17
    $region16: #{tpu_custom_call.1} parent=1 // pred_region
      %s58 = ssub.s32 2048, 2048
      %59 = vsyncadd [#allocation12], %s58
      %s60 = sshll.u32 [#allocation11], 4
      %s61 = int_to_ptr.vmem [resolvable:$true] %s60
      %66 = dma.hbm_to_vmem [thread:$0]  %s3, 2048, %s61, [#allocation12], 128, 128, 8
    $region17: #{tpu_custom_call.1} parent=1 // pred_fallthru
      _
    // Predicated region
    $region18: #{tpu_custom_call.1} parent=1 // pred_check
      _
    $region19: #{tpu_custom_call.1} parent=1 // pred_check_branch
      %68 = sbr.rel (0) target = $region21
    $region20: #{tpu_custom_call.1} parent=1 // pred_region
      %s70 = ssub.s32 2048, 2048
      %71 = vsyncadd [#allocation12], %s70
      %s72 = sshll.u32 [#allocation13], 4
      %s73 = int_to_ptr.vmem [resolvable:$true] %s72
      %78 = dma.hbm_to_vmem [thread:$0]  %s4, 2048, %s73, [#allocation12], 64, 64, 4
    $region21: #{tpu_custom_call.1} parent=1 // pred_fallthru
      _
    // Predicated region
    $region22: #{tpu_custom_call.1} parent=1 // pred_check
      _
    $region23: #{tpu_custom_call.1} parent=1 // pred_check_branch
      %80 = sbr.rel (0) target = $region25
    $region24: #{tpu_custom_call.1} parent=1 // pred_region
      %s82 = ssub.s32 2048, 2048
      %83 = vsyncadd [#allocation15], %s82
      %s84 = sshll.u32 [#allocation14], 4
      %s85 = int_to_ptr.vmem [resolvable:$true] %s84
      %90 = dma.hbm_to_vmem [thread:$0]  %s5, 2048, %s85, [#allocation15], 64, 64, 4
    $region25: #{tpu_custom_call.1} parent=1 // pred_fallthru
      _
    // Predicated region
    $region26: #{tpu_custom_call.1} parent=1 // pred_check
      _
    $region27: #{tpu_custom_call.1} parent=1 // pred_check_branch
      %92 = sbr.rel (0) target = $region29
    $region28: #{tpu_custom_call.1} parent=1 // pred_region
      %s94 = ssub.s32 1024, 1024
      %95 = vsyncadd [#allocation15], %s94
      %s96 = sshll.u32 [#allocation16], 4
      %s97 = int_to_ptr.vmem [resolvable:$true] %s96
      %102 = dma.hbm_to_vmem [thread:$0]  %s6, 1024, %s97, [#allocation15], 128, 128, 8
    $region29: #{tpu_custom_call.1} parent=1 // pred_fallthru
      _
    // Predicated region
    $region30: #{tpu_custom_call.1} parent=1 // pred_check
      _
    $region31: #{tpu_custom_call.1} parent=1 // pred_check_branch
      %104 = sbr.rel (0) target = $region33
    $region32: #{tpu_custom_call.1} parent=1 // pred_region
      %s106 = ssub.s32 1024, 1024
      %107 = vsyncadd [#allocation18], %s106
      %s108 = sshll.u32 [#allocation17], 4
      %s109 = int_to_ptr.vmem [resolvable:$true] %s108
      %114 = dma.hbm_to_vmem [thread:$0]  %s7, 1024, %s109, [#allocation18], 64, 64, 4
    $region33: #{tpu_custom_call.1} parent=1 // pred_fallthru
      _
    // Predicated region
    $region34: #{tpu_custom_call.1} parent=1 // pred_check
      _
    $region35: #{tpu_custom_call.1} parent=1 // pred_check_branch
      %116 = sbr.rel (0) target = $region37
    $region36: #{tpu_custom_call.1} parent=1 // pred_region
      %117 = dma.done [#allocation6], 128
    $region37: #{tpu_custom_call.1} parent=1 // pred_fallthru
      _
    // Predicated region
    $region38: #{tpu_custom_call.1} parent=1 // pred_check
      _
    $region39: #{tpu_custom_call.1} parent=1 // pred_check_branch
      %119 = sbr.rel (0) target = $region41
    $region40: #{tpu_custom_call.1} parent=1 // pred_region
      %120 = dma.done [#allocation9], 2048
    $region41: #{tpu_custom_call.1} parent=1 // pred_fallthru
      _
    // Predicated region
    $region42: #{tpu_custom_call.1} parent=1 // pred_check
      _
    $region43: #{tpu_custom_call.1} parent=1 // pred_check_branch
      %122 = sbr.rel (0) target = $region45
    $region44: #{tpu_custom_call.1} parent=1 // pred_region
      %123 = dma.done [#allocation9], 2048
    $region45: #{tpu_custom_call.1} parent=1 // pred_fallthru
      _
    // Predicated region
    $region46: #{tpu_custom_call.1} parent=1 // pred_check
      _
    $region47: #{tpu_custom_call.1} parent=1 // pred_check_branch
      %125 = sbr.rel (0) target = $region49
    $region48: #{tpu_custom_call.1} parent=1 // pred_region
      %126 = dma.done [#allocation12], 2048
    $region49: #{tpu_custom_call.1} parent=1 // pred_fallthru
      _
    // Predicated region
    $region50: #{tpu_custom_call.1} parent=1 // pred_check
      _
    $region51: #{tpu_custom_call.1} parent=1 // pred_check_branch
      %128 = sbr.rel (0) target = $region53
    $region52: #{tpu_custom_call.1} parent=1 // pred_region
      %129 = dma.done [#allocation12], 2048
    $region53: #{tpu_custom_call.1} parent=1 // pred_fallthru
      _
    // Predicated region
    $region54: #{tpu_custom_call.1} parent=1 // pred_check
      _
    $region55: #{tpu_custom_call.1} parent=1 // pred_check_branch
      %131 = sbr.rel (0) target = $region57
    $region56: #{tpu_custom_call.1} parent=1 // pred_region
      %132 = dma.done [#allocation15], 2048
    $region57: #{tpu_custom_call.1} parent=1 // pred_fallthru
      _
    // Predicated region
    $region58: #{tpu_custom_call.1} parent=1 // pred_check
      _
    $region59: #{tpu_custom_call.1} parent=1 // pred_check_branch
      %134 = sbr.rel (0) target = $region61
    $region60: #{tpu_custom_call.1} parent=1 // pred_region
      %135 = dma.done [#allocation15], 1024
    $region61: #{tpu_custom_call.1} parent=1 // pred_fallthru
      _
    // Predicated region
    $region62: #{tpu_custom_call.1} parent=1 // pred_check
      _
    $region63: #{tpu_custom_call.1} parent=1 // pred_check_branch
      %137 = sbr.rel (0) target = $region65
    $region64: #{tpu_custom_call.1} parent=1 // pred_region
      %138 = dma.done [#allocation18], 1024
    $region65: #{tpu_custom_call.1} parent=1 // pred_fallthru
      _
    %v140 = vld [vmem:[#allocation5] sm:$0xf]
    %v141 = vld [vmem:[#allocation5 + $0x4] sm:$0xf]
    %p142 = scmp.eq.s32.totalorder 0, 0
    // Predicated region
    $region66: #{tpu_custom_call.1} parent=1 // pred_check
      %p143 = pneg %p142
    $region67: #{tpu_custom_call.1} parent=1 // pred_check_branch
      %145 = sbr.rel (%p143) target = $region69
    $region68: #{tpu_custom_call.1} parent=1 // pred_region
      %vm146 = vcmask 523264
      %147 = vst.msk [vmem:[#allocation2] sm:$0xff] %vm146, 0.0
      %148 = vst.msk [vmem:[#allocation2 + $0x8] sm:$0xff] %vm146, 0.0
      %149 = vst [vmem:[#allocation3] sm:$0xff] 0.0
      %150 = vst [vmem:[#allocation3 + $0x8] sm:$0xff] 0.0
      %v151 = vld [vmem:[#allocation16] sm:$0xff]
      %v152 = vld [vmem:[#allocation16 + $0x8] sm:$0xff]
      %v153 = vld [vmem:[#allocation16 + $0x10] sm:$0xff]
      %v154 = vld [vmem:[#allocation16 + $0x18] sm:$0xff]
      %v155 = vld [vmem:[#allocation16 + $0x20] sm:$0xff]
      %v156 = vld [vmem:[#allocation16 + $0x28] sm:$0xff]
      %v157 = vld [vmem:[#allocation16 + $0x30] sm:$0xff]
      %v158 = vld [vmem:[#allocation16 + $0x38] sm:$0xff]
      %v161 = vunpack.c.l.b16 %v140
      %v162 = vunpack.c.l.b16 %v141
      %v163 = vpack.c.b16 %v162, %v161
      %v172 = vunpack.c.l.b16 %v151
      %v173 = vunpack.c.h.b16 %v151
      %v174 = vunpack.c.l.b16 %v152
      %v175 = vunpack.c.h.b16 %v152
      %v176 = vunpack.c.l.b16 %v153
      %v177 = vunpack.c.h.b16 %v153
      %v178 = vunpack.c.l.b16 %v154
      %v179 = vunpack.c.h.b16 %v154
      %v180 = vunpack.c.l.b16 %v155
      %v181 = vunpack.c.h.b16 %v155
      %v182 = vunpack.c.l.b16 %v156
      %v183 = vunpack.c.h.b16 %v156
      %v184 = vunpack.c.l.b16 %v157
      %v185 = vunpack.c.h.b16 %v157
      %v186 = vunpack.c.l.b16 %v158
      %v187 = vunpack.c.h.b16 %v158
      %v188 = vpack.c.b16 %v174, %v172
      %v189 = vpack.c.b16 %v175, %v173
      %v190 = vpack.c.b16 %v178, %v176
      %v191 = vpack.c.b16 %v179, %v177
      %v192 = vpack.c.b16 %v182, %v180
      %v193 = vpack.c.b16 %v183, %v181
      %v194 = vpack.c.b16 %v186, %v184
      %v195 = vpack.c.b16 %v187, %v185
      %v205 = vsel %vm146, %v163, 0
      %207 = vmatprep.subr.bf16.mxu0 %v189
      %208 = vmatpush1.bf16.msra.mxu0 %v188
      %209 = vmatprep.subr.bf16.mxu0 %v191
      %210 = vmatpush1.bf16.msra.mxu0 %v190
      %211 = vmatprep.subr.bf16.mxu0 %v193
      %212 = vmatpush1.bf16.msra.mxu0 %v192
      %213 = vmatprep.subr.bf16.mxu0 %v195
      %214 = vmatpush1.bf16.msra.mxu0 %v194
      %215 = vmatprep.subr.bf16.mxu0 0
      %216 = vmatpush1.bf16.msra.mxu0 0
      %217 = vmatprep.subr.bf16.mxu0 0
      %218 = vmatpush1.bf16.msra.mxu0 0
      %219 = vmatprep.subr.bf16.mxu0 0
      %220 = vmatpush1.bf16.msra.mxu0 0
      %221 = vmatprep.subr.bf16.mxu0 0
      %222 = vmatpush1.bf16.msra.mxu0 0
      %223 = vmatprep.subr.bf16.mxu0 0
      %224 = vmatpush1.bf16.msra.mxu0 0
      %225 = vmatprep.subr.bf16.mxu0 0
      %226 = vmatpush1.bf16.msra.mxu0 0
      %227 = vmatprep.subr.bf16.mxu0 0
      %228 = vmatpush1.bf16.msra.mxu0 0
      %229 = vmatprep.subr.bf16.mxu0 0
      %230 = vmatpush1.bf16.msra.mxu0 0
      %231 = vmatprep.subr.bf16.mxu0 0
      %232 = vmatpush1.bf16.msra.mxu0 0
      %233 = vmatprep.subr.bf16.mxu0 0
      %234 = vmatpush1.bf16.msra.mxu0 0
      %235 = vmatprep.subr.bf16.mxu0 0
      %236 = vmatpush1.bf16.msra.mxu0 0
      %237 = vmatprep.subr.bf16.mxu0 0
      %238 = vmatpush1.bf16.msra.mxu0 0
      %239 = vmatprep.mubr.bf16.mxu0 0
      %240 = vmatmul.mubr.bf16.gmra.mrb[0].mxu0 %v205
      %v241 = vpop.f32.mrb[0].mxu0
      %v242 = vadd.f32 0.0, %v241
      %v243 = vpop.f32.mrb[0].mxu0
      %v244 = vadd.f32 0.0, %v243
      %v245 = vpop.f32.mrb[0].mxu0
      %v246 = vadd.f32 0.0, %v245
      %v247 = vpop.f32.mrb[0].mxu0
      %v248 = vadd.f32 0.0, %v247
      %249 = vdwg.mxu0
      %v250 = vpack.c.bf16 %v246, %v242
      %v251 = vpack.c.bf16 %v248, %v244
      %252 = vst [vmem:[#allocation4] sm:$0xff] %v250
      %253 = vst [vmem:[#allocation4 + $0x8] sm:$0xff] %v251
    $region69: #{tpu_custom_call.1} parent=1 // pred_fallthru
      _
    %v254 = vld [vmem:[#allocation8] sm:$0xff]
    %v255 = vld [vmem:[#allocation8 + $0x8] sm:$0xff]
    %v256 = vld [vmem:[#allocation8 + $0x10] sm:$0xff]
    %v257 = vld [vmem:[#allocation8 + $0x18] sm:$0xff]
    %v258 = vld [vmem:[#allocation8 + $0x20] sm:$0xff]
    %v259 = vld [vmem:[#allocation8 + $0x28] sm:$0xff]
    %v260 = vld [vmem:[#allocation8 + $0x30] sm:$0xff]
    %v261 = vld [vmem:[#allocation8 + $0x38] sm:$0xff]
    %v262 = vld [vmem:[#allocation8 + $0x40] sm:$0xff]
    %v263 = vld [vmem:[#allocation8 + $0x48] sm:$0xff]
    %v264 = vld [vmem:[#allocation8 + $0x50] sm:$0xff]
    %v265 = vld [vmem:[#allocation8 + $0x58] sm:$0xff]
    %v266 = vld [vmem:[#allocation8 + $0x60] sm:$0xff]
    %v267 = vld [vmem:[#allocation8 + $0x68] sm:$0xff]
    %v268 = vld [vmem:[#allocation8 + $0x70] sm:$0xff]
    %v269 = vld [vmem:[#allocation8 + $0x78] sm:$0xff]
    %v272 = vunpack.c.l.b16 %v140
    %v273 = vunpack.c.l.b16 %v141
    %v274 = vpack.c.b16 %v273, %v272
    %v291 = vunpack.c.l.b16 %v254
    %v292 = vunpack.c.h.b16 %v254
    %v293 = vunpack.c.l.b16 %v255
    %v294 = vunpack.c.h.b16 %v255
    %v295 = vunpack.c.l.b16 %v256
    %v296 = vunpack.c.h.b16 %v256
    %v297 = vunpack.c.l.b16 %v257
    %v298 = vunpack.c.h.b16 %v257
    %v299 = vunpack.c.l.b16 %v258
    %v300 = vunpack.c.h.b16 %v258
    %v301 = vunpack.c.l.b16 %v259
    %v302 = vunpack.c.h.b16 %v259
    %v303 = vunpack.c.l.b16 %v260
    %v304 = vunpack.c.h.b16 %v260
    %v305 = vunpack.c.l.b16 %v261
    %v306 = vunpack.c.h.b16 %v261
    %v307 = vunpack.c.l.b16 %v262
    %v308 = vunpack.c.h.b16 %v262
    %v309 = vunpack.c.l.b16 %v263
    %v310 = vunpack.c.h.b16 %v263
    %v311 = vunpack.c.l.b16 %v264
    %v312 = vunpack.c.h.b16 %v264
    %v313 = vunpack.c.l.b16 %v265
    %v314 = vunpack.c.h.b16 %v265
    %v315 = vunpack.c.l.b16 %v266
    %v316 = vunpack.c.h.b16 %v266
    %v317 = vunpack.c.l.b16 %v267
    %v318 = vunpack.c.h.b16 %v267
    %v319 = vunpack.c.l.b16 %v268
    %v320 = vunpack.c.h.b16 %v268
    %v321 = vunpack.c.l.b16 %v269
    %v322 = vunpack.c.h.b16 %v269
    %v323 = vpack.c.b16 %v295, %v291
    %v324 = vpack.c.b16 %v296, %v292
    %v325 = vpack.c.b16 %v297, %v293
    %v326 = vpack.c.b16 %v298, %v294
    %v327 = vpack.c.b16 %v303, %v299
    %v328 = vpack.c.b16 %v304, %v300
    %v329 = vpack.c.b16 %v305, %v301
    %v330 = vpack.c.b16 %v306, %v302
    %v331 = vpack.c.b16 %v311, %v307
    %v332 = vpack.c.b16 %v312, %v308
    %v333 = vpack.c.b16 %v313, %v309
    %v334 = vpack.c.b16 %v314, %v310
    %v335 = vpack.c.b16 %v319, %v315
    %v336 = vpack.c.b16 %v320, %v316
    %v337 = vpack.c.b16 %v321, %v317
    %v338 = vpack.c.b16 %v322, %v318
    %vm355 = vcmask 523264
    %v357 = vsel %vm355, %v274, 0
    %359 = vmatprep.subr.bf16.mxu0 %v324
    %360 = vmatpush1.bf16.msra.mxu0 %v323
    %361 = vmatprep.subr.bf16.mxu0 %v328
    %362 = vmatpush1.bf16.msra.mxu0 %v327
    %363 = vmatprep.subr.bf16.mxu0 %v332
    %364 = vmatpush1.bf16.msra.mxu0 %v331
    %365 = vmatprep.subr.bf16.mxu0 %v336
    %366 = vmatpush1.bf16.msra.mxu0 %v335
    %367 = vmatprep.subr.bf16.mxu0 0
    %368 = vmatpush1.bf16.msra.mxu0 0
    %369 = vmatprep.subr.bf16.mxu0 0
    %370 = vmatpush1.bf16.msra.mxu0 0
    %371 = vmatprep.subr.bf16.mxu0 0
    %372 = vmatpush1.bf16.msra.mxu0 0
    %373 = vmatprep.subr.bf16.mxu0 0
    %374 = vmatpush1.bf16.msra.mxu0 0
    %375 = vmatprep.subr.bf16.mxu0 0
    %376 = vmatpush1.bf16.msra.mxu0 0
    %377 = vmatprep.subr.bf16.mxu0 0
    %378 = vmatpush1.bf16.msra.mxu0 0
    %379 = vmatprep.subr.bf16.mxu0 0
    %380 = vmatpush1.bf16.msra.mxu0 0
    %381 = vmatprep.subr.bf16.mxu0 0
    %382 = vmatpush1.bf16.msra.mxu0 0
    %383 = vmatprep.subr.bf16.mxu0 0
    %384 = vmatpush1.bf16.msra.mxu0 0
    %385 = vmatprep.subr.bf16.mxu0 0
    %386 = vmatpush1.bf16.msra.mxu0 0
    %387 = vmatprep.subr.bf16.mxu0 0
    %388 = vmatpush1.bf16.msra.mxu0 0
    %389 = vmatprep.subr.bf16.mxu0 0
    %390 = vmatpush1.bf16.msra.mxu0 0
    %391 = vmatprep.mubr.bf16.mxu0 0
    %392 = vmatmul.mubr.bf16.gmra.mrb[0].mxu0 %v357
    %v393 = vpop.f32.mrb[0].mxu0
    %v394 = vadd.f32 0.0, %v393
    %v395 = vpop.f32.mrb[0].mxu0
    %v396 = vadd.f32 0.0, %v395
    %v397 = vpop.f32.mrb[0].mxu0
    %v398 = vadd.f32 0.0, %v397
    %v399 = vpop.f32.mrb[0].mxu0
    %v400 = vadd.f32 0.0, %v399
    %401 = vdwg.mxu0
    %402 = vmatprep.subr.bf16.mxu0 %v326
    %403 = vmatpush1.bf16.msra.mxu0 %v325
    %404 = vmatprep.subr.bf16.mxu0 %v330
    %405 = vmatpush1.bf16.msra.mxu0 %v329
    %406 = vmatprep.subr.bf16.mxu0 %v334
    %407 = vmatpush1.bf16.msra.mxu0 %v333
    %408 = vmatprep.subr.bf16.mxu0 %v338
    %409 = vmatpush1.bf16.msra.mxu0 %v337
    %410 = vmatprep.subr.bf16.mxu0 0
    %411 = vmatpush1.bf16.msra.mxu0 0
    %412 = vmatprep.subr.bf16.mxu0 0
    %413 = vmatpush1.bf16.msra.mxu0 0
    %414 = vmatprep.subr.bf16.mxu0 0
    %415 = vmatpush1.bf16.msra.mxu0 0
    %416 = vmatprep.subr.bf16.mxu0 0
    %417 = vmatpush1.bf16.msra.mxu0 0
    %418 = vmatprep.subr.bf16.mxu0 0
    %419 = vmatpush1.bf16.msra.mxu0 0
    %420 = vmatprep.subr.bf16.mxu0 0
    %421 = vmatpush1.bf16.msra.mxu0 0
    %422 = vmatprep.subr.bf16.mxu0 0
    %423 = vmatpush1.bf16.msra.mxu0 0
    %424 = vmatprep.subr.bf16.mxu0 0
    %425 = vmatpush1.bf16.msra.mxu0 0
    %426 = vmatprep.subr.bf16.mxu0 0
    %427 = vmatpush1.bf16.msra.mxu0 0
    %428 = vmatprep.subr.bf16.mxu0 0
    %429 = vmatpush1.bf16.msra.mxu0 0
    %430 = vmatprep.subr.bf16.mxu0 0
    %431 = vmatpush1.bf16.msra.mxu0 0
    %432 = vmatprep.subr.bf16.mxu0 0
    %433 = vmatpush1.bf16.msra.mxu0 0
    %434 = vmatprep.mubr.bf16.mxu0 0
    %435 = vmatmul.mubr.bf16.gmra.mrb[0].mxu0 %v357
    %v436 = vpop.f32.mrb[0].mxu0
    %v437 = vadd.f32 0.0, %v436
    %v438 = vpop.f32.mrb[0].mxu0
    %v439 = vadd.f32 0.0, %v438
    %v440 = vpop.f32.mrb[0].mxu0
    %v441 = vadd.f32 0.0, %v440
    %v442 = vpop.f32.mrb[0].mxu0
    %v443 = vadd.f32 0.0, %v442
    %444 = vdwg.mxu0
    %v445 = vld [vmem:[#allocation4] sm:$0xff]
    %v446 = vld [vmem:[#allocation4 + $0x8] sm:$0xff]
    %v447 = vld [vmem:[#allocation10] sm:$0xff]
    %v448 = vld [vmem:[#allocation10 + $0x8] sm:$0xff]
    %v449 = vld [vmem:[#allocation10 + $0x10] sm:$0xff]
    %v450 = vld [vmem:[#allocation10 + $0x18] sm:$0xff]
    %v451 = vld [vmem:[#allocation10 + $0x20] sm:$0xff]
    %v452 = vld [vmem:[#allocation10 + $0x28] sm:$0xff]
    %v453 = vld [vmem:[#allocation10 + $0x30] sm:$0xff]
    %v454 = vld [vmem:[#allocation10 + $0x38] sm:$0xff]
    %v455 = vld [vmem:[#allocation10 + $0x40] sm:$0xff]
    %v456 = vld [vmem:[#allocation10 + $0x48] sm:$0xff]
    %v457 = vld [vmem:[#allocation10 + $0x50] sm:$0xff]
    %v458 = vld [vmem:[#allocation10 + $0x58] sm:$0xff]
    %v459 = vld [vmem:[#allocation10 + $0x60] sm:$0xff]
    %v460 = vld [vmem:[#allocation10 + $0x68] sm:$0xff]
    %v461 = vld [vmem:[#allocation10 + $0x70] sm:$0xff]
    %v462 = vld [vmem:[#allocation10 + $0x78] sm:$0xff]
    %v479 = vunpack.c.l.b16 %v447
    %v480 = vunpack.c.h.b16 %v447
    %v481 = vunpack.c.l.b16 %v448
    %v482 = vunpack.c.h.b16 %v448
    %v483 = vunpack.c.l.b16 %v449
    %v484 = vunpack.c.h.b16 %v449
    %v485 = vunpack.c.l.b16 %v450
    %v486 = vunpack.c.h.b16 %v450
    %v487 = vunpack.c.l.b16 %v451
    %v488 = vunpack.c.h.b16 %v451
    %v489 = vunpack.c.l.b16 %v452
    %v490 = vunpack.c.h.b16 %v452
    %v491 = vunpack.c.l.b16 %v453
    %v492 = vunpack.c.h.b16 %v453
    %v493 = vunpack.c.l.b16 %v454
    %v494 = vunpack.c.h.b16 %v454
    %v495 = vunpack.c.l.b16 %v455
    %v496 = vunpack.c.h.b16 %v455
    %v497 = vunpack.c.l.b16 %v456
    %v498 = vunpack.c.h.b16 %v456
    %v499 = vunpack.c.l.b16 %v457
    %v500 = vunpack.c.h.b16 %v457
    %v501 = vunpack.c.l.b16 %v458
    %v502 = vunpack.c.h.b16 %v458
    %v503 = vunpack.c.l.b16 %v459
    %v504 = vunpack.c.h.b16 %v459
    %v505 = vunpack.c.l.b16 %v460
    %v506 = vunpack.c.h.b16 %v460
    %v507 = vunpack.c.l.b16 %v461
    %v508 = vunpack.c.h.b16 %v461
    %v509 = vunpack.c.l.b16 %v462
    %v510 = vunpack.c.h.b16 %v462
    %v511 = vpack.c.b16 %v481, %v479
    %v512 = vpack.c.b16 %v482, %v480
    %v513 = vpack.c.b16 %v485, %v483
    %v514 = vpack.c.b16 %v486, %v484
    %v515 = vpack.c.b16 %v489, %v487
    %v516 = vpack.c.b16 %v490, %v488
    %v517 = vpack.c.b16 %v493, %v491
    %v518 = vpack.c.b16 %v494, %v492
    %v519 = vpack.c.b16 %v497, %v495
    %v520 = vpack.c.b16 %v498, %v496
    %v521 = vpack.c.b16 %v501, %v499
    %v522 = vpack.c.b16 %v502, %v500
    %v523 = vpack.c.b16 %v505, %v503
    %v524 = vpack.c.b16 %v506, %v504
    %v525 = vpack.c.b16 %v509, %v507
    %v526 = vpack.c.b16 %v510, %v508
    %543 = vmatprep.subr.bf16.mxu0 %v512
    %544 = vmatpush1.bf16.msra.mxu0 %v511
    %545 = vmatprep.subr.bf16.mxu0 %v514
    %546 = vmatpush1.bf16.msra.mxu0 %v513
    %547 = vmatprep.subr.bf16.mxu0 %v516
    %548 = vmatpush1.bf16.msra.mxu0 %v515
    %549 = vmatprep.subr.bf16.mxu0 %v518
    %550 = vmatpush1.bf16.msra.mxu0 %v517
    %551 = vmatprep.subr.bf16.mxu0 %v520
    %552 = vmatpush1.bf16.msra.mxu0 %v519
    %553 = vmatprep.subr.bf16.mxu0 %v522
    %554 = vmatpush1.bf16.msra.mxu0 %v521
    %555 = vmatprep.subr.bf16.mxu0 %v524
    %556 = vmatpush1.bf16.msra.mxu0 %v523
    %557 = vmatprep.subr.bf16.mxu0 %v526
    %558 = vmatpush1.bf16.msra.mxu0 %v525
    %559 = vmatprep.subr.bf16.mxu0 0
    %560 = vmatpush1.bf16.msra.mxu0 0
    %561 = vmatprep.subr.bf16.mxu0 0
    %562 = vmatpush1.bf16.msra.mxu0 0
    %563 = vmatprep.subr.bf16.mxu0 0
    %564 = vmatpush1.bf16.msra.mxu0 0
    %565 = vmatprep.subr.bf16.mxu0 0
    %566 = vmatpush1.bf16.msra.mxu0 0
    %567 = vmatprep.subr.bf16.mxu0 0
    %568 = vmatpush1.bf16.msra.mxu0 0
    %569 = vmatprep.subr.bf16.mxu0 0
    %570 = vmatpush1.bf16.msra.mxu0 0
    %571 = vmatprep.subr.bf16.mxu0 0
    %572 = vmatpush1.bf16.msra.mxu0 0
    %573 = vmatprep.subr.bf16.mxu0 0
    %574 = vmatpush1.bf16.msra.mxu0 0
    %575 = vmatprep.mubr.bf16.mxu0 0
    %576 = vmatmul.mubr.bf16.gmra.mrb[0].mxu0 %v445
    %v577 = vpop.f32.mrb[0].mxu0
    %v578 = vadd.f32 0.0, %v577
    %v579 = vpop.f32.mrb[0].mxu0
    %v580 = vadd.f32 0.0, %v579
    %v581 = vpop.f32.mrb[0].mxu0
    %v582 = vadd.f32 0.0, %v581
    %v583 = vpop.f32.mrb[0].mxu0
    %v584 = vadd.f32 0.0, %v583
    %585 = vdwg.mxu0
    %v586 = vadd.f32 %v394, %v578
    %v587 = vadd.f32 %v396, %v580
    %v588 = vadd.f32 %v398, %v582
    %v589 = vadd.f32 %v400, %v584
    %v590 = vld [vmem:[#allocation11] sm:$0xff]
    %v591 = vld [vmem:[#allocation11 + $0x8] sm:$0xff]
    %v592 = vld [vmem:[#allocation11 + $0x10] sm:$0xff]
    %v593 = vld [vmem:[#allocation11 + $0x18] sm:$0xff]
    %v594 = vld [vmem:[#allocation11 + $0x20] sm:$0xff]
    %v595 = vld [vmem:[#allocation11 + $0x28] sm:$0xff]
    %v596 = vld [vmem:[#allocation11 + $0x30] sm:$0xff]
    %v597 = vld [vmem:[#allocation11 + $0x38] sm:$0xff]
    %v598 = vld [vmem:[#allocation11 + $0x40] sm:$0xff]
    %v599 = vld [vmem:[#allocation11 + $0x48] sm:$0xff]
    %v600 = vld [vmem:[#allocation11 + $0x50] sm:$0xff]
    %v601 = vld [vmem:[#allocation11 + $0x58] sm:$0xff]
    %v602 = vld [vmem:[#allocation11 + $0x60] sm:$0xff]
    %v603 = vld [vmem:[#allocation11 + $0x68] sm:$0xff]
    %v604 = vld [vmem:[#allocation11 + $0x70] sm:$0xff]
    %v605 = vld [vmem:[#allocation11 + $0x78] sm:$0xff]
    %v622 = vunpack.c.l.b16 %v590
    %v623 = vunpack.c.h.b16 %v590
    %v624 = vunpack.c.l.b16 %v591
    %v625 = vunpack.c.h.b16 %v591
    %v626 = vunpack.c.l.b16 %v592
    %v627 = vunpack.c.h.b16 %v592
    %v628 = vunpack.c.l.b16 %v593
    %v629 = vunpack.c.h.b16 %v593
    %v630 = vunpack.c.l.b16 %v594
    %v631 = vunpack.c.h.b16 %v594
    %v632 = vunpack.c.l.b16 %v595
    %v633 = vunpack.c.h.b16 %v595
    %v634 = vunpack.c.l.b16 %v596
    %v635 = vunpack.c.h.b16 %v596
    %v636 = vunpack.c.l.b16 %v597
    %v637 = vunpack.c.h.b16 %v597
    %v638 = vunpack.c.l.b16 %v598
    %v639 = vunpack.c.h.b16 %v598
    %v640 = vunpack.c.l.b16 %v599
    %v641 = vunpack.c.h.b16 %v599
    %v642 = vunpack.c.l.b16 %v600
    %v643 = vunpack.c.h.b16 %v600
    %v644 = vunpack.c.l.b16 %v601
    %v645 = vunpack.c.h.b16 %v601
    %v646 = vunpack.c.l.b16 %v602
    %v647 = vunpack.c.h.b16 %v602
    %v648 = vunpack.c.l.b16 %v603
    %v649 = vunpack.c.h.b16 %v603
    %v650 = vunpack.c.l.b16 %v604
    %v651 = vunpack.c.h.b16 %v604
    %v652 = vunpack.c.l.b16 %v605
    %v653 = vunpack.c.h.b16 %v605
    %v654 = vpack.c.b16 %v624, %v622
    %v655 = vpack.c.b16 %v625, %v623
    %v656 = vpack.c.b16 %v628, %v626
    %v657 = vpack.c.b16 %v629, %v627
    %v658 = vpack.c.b16 %v632, %v630
    %v659 = vpack.c.b16 %v633, %v631
    %v660 = vpack.c.b16 %v636, %v634
    %v661 = vpack.c.b16 %v637, %v635
    %v662 = vpack.c.b16 %v640, %v638
    %v663 = vpack.c.b16 %v641, %v639
    %v664 = vpack.c.b16 %v644, %v642
    %v665 = vpack.c.b16 %v645, %v643
    %v666 = vpack.c.b16 %v648, %v646
    %v667 = vpack.c.b16 %v649, %v647
    %v668 = vpack.c.b16 %v652, %v650
    %v669 = vpack.c.b16 %v653, %v651
    %686 = vmatprep.subr.bf16.mxu0 %v655
    %687 = vmatpush1.bf16.msra.mxu0 %v654
    %688 = vmatprep.subr.bf16.mxu0 %v657
    %689 = vmatpush1.bf16.msra.mxu0 %v656
    %690 = vmatprep.subr.bf16.mxu0 %v659
    %691 = vmatpush1.bf16.msra.mxu0 %v658
    %692 = vmatprep.subr.bf16.mxu0 %v661
    %693 = vmatpush1.bf16.msra.mxu0 %v660
    %694 = vmatprep.subr.bf16.mxu0 %v663
    %695 = vmatpush1.bf16.msra.mxu0 %v662
    %696 = vmatprep.subr.bf16.mxu0 %v665
    %697 = vmatpush1.bf16.msra.mxu0 %v664
    %698 = vmatprep.subr.bf16.mxu0 %v667
    %699 = vmatpush1.bf16.msra.mxu0 %v666
    %700 = vmatprep.subr.bf16.mxu0 %v669
    %701 = vmatpush1.bf16.msra.mxu0 %v668
    %702 = vmatprep.subr.bf16.mxu0 0
    %703 = vmatpush1.bf16.msra.mxu0 0
    %704 = vmatprep.subr.bf16.mxu0 0
    %705 = vmatpush1.bf16.msra.mxu0 0
    %706 = vmatprep.subr.bf16.mxu0 0
    %707 = vmatpush1.bf16.msra.mxu0 0
    %708 = vmatprep.subr.bf16.mxu0 0
    %709 = vmatpush1.bf16.msra.mxu0 0
    %710 = vmatprep.subr.bf16.mxu0 0
    %711 = vmatpush1.bf16.msra.mxu0 0
    %712 = vmatprep.subr.bf16.mxu0 0
    %713 = vmatpush1.bf16.msra.mxu0 0
    %714 = vmatprep.subr.bf16.mxu0 0
    %715 = vmatpush1.bf16.msra.mxu0 0
    %716 = vmatprep.subr.bf16.mxu0 0
    %717 = vmatpush1.bf16.msra.mxu0 0
    %718 = vmatprep.mubr.bf16.mxu0 0
    %719 = vmatmul.mubr.bf16.gmra.mrb[0].mxu0 %v446
    %v720 = vpop.f32.mrb[0].mxu0
    %v721 = vadd.f32 0.0, %v720
    %v722 = vpop.f32.mrb[0].mxu0
    %v723 = vadd.f32 0.0, %v722
    %v724 = vpop.f32.mrb[0].mxu0
    %v725 = vadd.f32 0.0, %v724
    %v726 = vpop.f32.mrb[0].mxu0
    %v727 = vadd.f32 0.0, %v726
    %728 = vdwg.mxu0
    %v729 = vadd.f32 %v437, %v721
    %v730 = vadd.f32 %v439, %v723
    %v731 = vadd.f32 %v441, %v725
    %v732 = vadd.f32 %v443, %v727
    %v733 = vxor.u32 %v586, 2147483648
    %v734 = vxor.u32 %v587, 2147483648
    %v735 = vxor.u32 %v588, 2147483648
    %v736 = vxor.u32 %v589, 2147483648
    %v737 = vmul.f32 %v733, 1.442695
    %v738 = vpow.pop %v737
    %v739 = vmul.f32 %v734, 1.442695
    %v740 = vpow.pop %v739
    %v741 = vmul.f32 %v735, 1.442695
    %v742 = vpow.pop %v741
    %v743 = vmul.f32 %v736, 1.442695
    %v744 = vpow.pop %v743
    %v745 = vadd.f32 %v738, 1.0
    %v746 = vadd.f32 %v740, 1.0
    %v747 = vadd.f32 %v742, 1.0
    %v748 = vadd.f32 %v744, 1.0
    %v749 = vrcp.pop %v745
    %v750 = vmul.f32 1.0, %v749
    %v751 = vrcp.pop %v746
    %v752 = vmul.f32 1.0, %v751
    %v753 = vrcp.pop %v747
    %v754 = vmul.f32 1.0, %v753
    %v755 = vrcp.pop %v748
    %v756 = vmul.f32 1.0, %v755
    %v757 = vmul.f32 %v586, %v750
    %v758 = vmul.f32 %v587, %v752
    %v759 = vmul.f32 %v588, %v754
    %v760 = vmul.f32 %v589, %v756
    %v761 = vmul.f32 %v757, %v729
    %v762 = vmul.f32 %v758, %v730
    %v763 = vmul.f32 %v759, %v731
    %v764 = vmul.f32 %v760, %v732
    %v765 = vpack.c.bf16 %v763, %v761
    %v766 = vpack.c.bf16 %v764, %v762
    %v767 = vld [vmem:[#allocation2] sm:$0xff]
    %v768 = vld [vmem:[#allocation2 + $0x8] sm:$0xff]
    %v769 = vld [vmem:[#allocation13] sm:$0xf]
    %v770 = vld [vmem:[#allocation13 + $0x4] sm:$0xf]
    %v771 = vld [vmem:[#allocation13 + $0x8] sm:$0xf]
    %v772 = vld [vmem:[#allocation13 + $0xc] sm:$0xf]
    %v773 = vld [vmem:[#allocation13 + $0x10] sm:$0xf]
    %v774 = vld [vmem:[#allocation13 + $0x14] sm:$0xf]
    %v775 = vld [vmem:[#allocation13 + $0x18] sm:$0xf]
    %v776 = vld [vmem:[#allocation13 + $0x1c] sm:$0xf]
    %v777 = vld [vmem:[#allocation13 + $0x20] sm:$0xf]
    %v778 = vld [vmem:[#allocation13 + $0x24] sm:$0xf]
    %v779 = vld [vmem:[#allocation13 + $0x28] sm:$0xf]
    %v780 = vld [vmem:[#allocation13 + $0x2c] sm:$0xf]
    %v781 = vld [vmem:[#allocation13 + $0x30] sm:$0xf]
    %v782 = vld [vmem:[#allocation13 + $0x34] sm:$0xf]
    %v783 = vld [vmem:[#allocation13 + $0x38] sm:$0xf]
    %v784 = vld [vmem:[#allocation13 + $0x3c] sm:$0xf]
    %v785 = vld [vmem:[#allocation13 + $0x40] sm:$0xf]
    %v786 = vld [vmem:[#allocation13 + $0x44] sm:$0xf]
    %v787 = vld [vmem:[#allocation13 + $0x48] sm:$0xf]
    %v788 = vld [vmem:[#allocation13 + $0x4c] sm:$0xf]
    %v789 = vld [vmem:[#allocation13 + $0x50] sm:$0xf]
    %v790 = vld [vmem:[#allocation13 + $0x54] sm:$0xf]
    %v791 = vld [vmem:[#allocation13 + $0x58] sm:$0xf]
    %v792 = vld [vmem:[#allocation13 + $0x5c] sm:$0xf]
    %v793 = vld [vmem:[#allocation13 + $0x60] sm:$0xf]
    %v794 = vld [vmem:[#allocation13 + $0x64] sm:$0xf]
    %v795 = vld [vmem:[#allocation13 + $0x68] sm:$0xf]
    %v796 = vld [vmem:[#allocation13 + $0x6c] sm:$0xf]
    %v797 = vld [vmem:[#allocation13 + $0x70] sm:$0xf]
    %v798 = vld [vmem:[#allocation13 + $0x74] sm:$0xf]
    %v799 = vld [vmem:[#allocation13 + $0x78] sm:$0xf]
    %v800 = vld [vmem:[#allocation13 + $0x7c] sm:$0xf]
    %v833 = vunpack.c.l.b16 %v769
    %v834 = vunpack.c.l.b16 %v770
    %v835 = vunpack.c.l.b16 %v771
    %v836 = vunpack.c.l.b16 %v772
    %v837 = vunpack.c.l.b16 %v773
    %v838 = vunpack.c.l.b16 %v774
    %v839 = vunpack.c.l.b16 %v775
    %v840 = vunpack.c.l.b16 %v776
    %v841 = vunpack.c.l.b16 %v777
    %v842 = vunpack.c.l.b16 %v778
    %v843 = vunpack.c.l.b16 %v779
    %v844 = vunpack.c.l.b16 %v780
    %v845 = vunpack.c.l.b16 %v781
    %v846 = vunpack.c.l.b16 %v782
    %v847 = vunpack.c.l.b16 %v783
    %v848 = vunpack.c.l.b16 %v784
    %v849 = vunpack.c.l.b16 %v785
    %v850 = vunpack.c.l.b16 %v786
    %v851 = vunpack.c.l.b16 %v787
    %v852 = vunpack.c.l.b16 %v788
    %v853 = vunpack.c.l.b16 %v789
    %v854 = vunpack.c.l.b16 %v790
    %v855 = vunpack.c.l.b16 %v791
    %v856 = vunpack.c.l.b16 %v792
    %v857 = vunpack.c.l.b16 %v793
    %v858 = vunpack.c.l.b16 %v794
    %v859 = vunpack.c.l.b16 %v795
    %v860 = vunpack.c.l.b16 %v796
    %v861 = vunpack.c.l.b16 %v797
    %v862 = vunpack.c.l.b16 %v798
    %v863 = vunpack.c.l.b16 %v799
    %v864 = vunpack.c.l.b16 %v800
    %v865 = vpack.c.b16 %v834, %v833
    %v866 = vpack.c.b16 %v836, %v835
    %v867 = vpack.c.b16 %v838, %v837
    %v868 = vpack.c.b16 %v840, %v839
    %v869 = vpack.c.b16 %v842, %v841
    %v870 = vpack.c.b16 %v844, %v843
    %v871 = vpack.c.b16 %v846, %v845
    %v872 = vpack.c.b16 %v848, %v847
    %v873 = vpack.c.b16 %v850, %v849
    %v874 = vpack.c.b16 %v852, %v851
    %v875 = vpack.c.b16 %v854, %v853
    %v876 = vpack.c.b16 %v856, %v855
    %v877 = vpack.c.b16 %v858, %v857
    %v878 = vpack.c.b16 %v860, %v859
    %v879 = vpack.c.b16 %v862, %v861
    %v880 = vpack.c.b16 %v864, %v863
    %897 = vmatprep.subr.bf16.mxu0 0
    %898 = vmatpush1.bf16.msra.mxu0 %v865
    %899 = vmatprep.subr.bf16.mxu0 0
    %900 = vmatpush1.bf16.msra.mxu0 %v866
    %901 = vmatprep.subr.bf16.mxu0 0
    %902 = vmatpush1.bf16.msra.mxu0 %v867
    %903 = vmatprep.subr.bf16.mxu0 0
    %904 = vmatpush1.bf16.msra.mxu0 %v868
    %905 = vmatprep.subr.bf16.mxu0 0
    %906 = vmatpush1.bf16.msra.mxu0 %v869
    %907 = vmatprep.subr.bf16.mxu0 0
    %908 = vmatpush1.bf16.msra.mxu0 %v870
    %909 = vmatprep.subr.bf16.mxu0 0
    %910 = vmatpush1.bf16.msra.mxu0 %v871
    %911 = vmatprep.subr.bf16.mxu0 0
    %912 = vmatpush1.bf16.msra.mxu0 %v872
    %913 = vmatprep.subr.bf16.mxu0 0
    %914 = vmatpush1.bf16.msra.mxu0 %v873
    %915 = vmatprep.subr.bf16.mxu0 0
    %916 = vmatpush1.bf16.msra.mxu0 %v874
    %917 = vmatprep.subr.bf16.mxu0 0
    %918 = vmatpush1.bf16.msra.mxu0 %v875
    %919 = vmatprep.subr.bf16.mxu0 0
    %920 = vmatpush1.bf16.msra.mxu0 %v876
    %921 = vmatprep.subr.bf16.mxu0 0
    %922 = vmatpush1.bf16.msra.mxu0 %v877
    %923 = vmatprep.subr.bf16.mxu0 0
    %924 = vmatpush1.bf16.msra.mxu0 %v878
    %925 = vmatprep.subr.bf16.mxu0 0
    %926 = vmatpush1.bf16.msra.mxu0 %v879
    %927 = vmatprep.subr.bf16.mxu0 0
    %928 = vmatpush1.bf16.msra.mxu0 %v880
    %929 = vmatprep.mubr.bf16.mxu0 %v766
    %930 = vmatmul.mubr.bf16.gmra.mrb[0].mxu0 %v765
    %v931 = vpop.f32.mrb[0].mxu0
    %v932 = vadd.f32 0.0, %v931
    %v933 = vpop.f32.mrb[0].mxu0
    %v934 = vpop.f32.mrb[0].mxu0
    %v935 = vadd.f32 0.0, %v934
    %v936 = vpop.f32.mrb[0].mxu0
    %937 = vdwg.mxu0
    %v938 = vadd.f32 %v767, %v932
    %v939 = vadd.f32 %v768, %v935
    %940 = vst.msk [vmem:[#allocation2] sm:$0xff] %vm355, %v938
    %941 = vst.msk [vmem:[#allocation2 + $0x8] sm:$0xff] %vm355, %v939
    %v942 = vld [vmem:[#allocation3] sm:$0xff]
    %v943 = vld [vmem:[#allocation3 + $0x8] sm:$0xff]
    %v944 = vld [vmem:[#allocation14] sm:$0xf]
    %v945 = vld [vmem:[#allocation14 + $0x4] sm:$0xf]
    %v946 = vld [vmem:[#allocation14 + $0x8] sm:$0xf]
    %v947 = vld [vmem:[#allocation14 + $0xc] sm:$0xf]
    %v948 = vld [vmem:[#allocation14 + $0x10] sm:$0xf]
    %v949 = vld [vmem:[#allocation14 + $0x14] sm:$0xf]
    %v950 = vld [vmem:[#allocation14 + $0x18] sm:$0xf]
    %v951 = vld [vmem:[#allocation14 + $0x1c] sm:$0xf]
    %v952 = vld [vmem:[#allocation14 + $0x20] sm:$0xf]
    %v953 = vld [vmem:[#allocation14 + $0x24] sm:$0xf]
    %v954 = vld [vmem:[#allocation14 + $0x28] sm:$0xf]
    %v955 = vld [vmem:[#allocation14 + $0x2c] sm:$0xf]
    %v956 = vld [vmem:[#allocation14 + $0x30] sm:$0xf]
    %v957 = vld [vmem:[#allocation14 + $0x34] sm:$0xf]
    %v958 = vld [vmem:[#allocation14 + $0x38] sm:$0xf]
    %v959 = vld [vmem:[#allocation14 + $0x3c] sm:$0xf]
    %v960 = vld [vmem:[#allocation14 + $0x40] sm:$0xf]
    %v961 = vld [vmem:[#allocation14 + $0x44] sm:$0xf]
    %v962 = vld [vmem:[#allocation14 + $0x48] sm:$0xf]
    %v963 = vld [vmem:[#allocation14 + $0x4c] sm:$0xf]
    %v964 = vld [vmem:[#allocation14 + $0x50] sm:$0xf]
    %v965 = vld [vmem:[#allocation14 + $0x54] sm:$0xf]
    %v966 = vld [vmem:[#allocation14 + $0x58] sm:$0xf]
    %v967 = vld [vmem:[#allocation14 + $0x5c] sm:$0xf]
    %v968 = vld [vmem:[#allocation14 + $0x60] sm:$0xf]
    %v969 = vld [vmem:[#allocation14 + $0x64] sm:$0xf]
    %v970 = vld [vmem:[#allocation14 + $0x68] sm:$0xf]
    %v971 = vld [vmem:[#allocation14 + $0x6c] sm:$0xf]
    %v972 = vld [vmem:[#allocation14 + $0x70] sm:$0xf]
    %v973 = vld [vmem:[#allocation14 + $0x74] sm:$0xf]
    %v974 = vld [vmem:[#allocation14 + $0x78] sm:$0xf]
    %v975 = vld [vmem:[#allocation14 + $0x7c] sm:$0xf]
    %v1008 = vunpack.c.l.b16 %v944
    %v1009 = vunpack.c.l.b16 %v945
    %v1010 = vunpack.c.l.b16 %v946
    %v1011 = vunpack.c.l.b16 %v947
    %v1012 = vunpack.c.l.b16 %v948
    %v1013 = vunpack.c.l.b16 %v949
    %v1014 = vunpack.c.l.b16 %v950
    %v1015 = vunpack.c.l.b16 %v951
    %v1016 = vunpack.c.l.b16 %v952
    %v1017 = vunpack.c.l.b16 %v953
    %v1018 = vunpack.c.l.b16 %v954
    %v1019 = vunpack.c.l.b16 %v955
    %v1020 = vunpack.c.l.b16 %v956
    %v1021 = vunpack.c.l.b16 %v957
    %v1022 = vunpack.c.l.b16 %v958
    %v1023 = vunpack.c.l.b16 %v959
    %v1024 = vunpack.c.l.b16 %v960
    %v1025 = vunpack.c.l.b16 %v961
    %v1026 = vunpack.c.l.b16 %v962
    %v1027 = vunpack.c.l.b16 %v963
    %v1028 = vunpack.c.l.b16 %v964
    %v1029 = vunpack.c.l.b16 %v965
    %v1030 = vunpack.c.l.b16 %v966
    %v1031 = vunpack.c.l.b16 %v967
    %v1032 = vunpack.c.l.b16 %v968
    %v1033 = vunpack.c.l.b16 %v969
    %v1034 = vunpack.c.l.b16 %v970
    %v1035 = vunpack.c.l.b16 %v971
    %v1036 = vunpack.c.l.b16 %v972
    %v1037 = vunpack.c.l.b16 %v973
    %v1038 = vunpack.c.l.b16 %v974
    %v1039 = vunpack.c.l.b16 %v975
    %v1040 = vpack.c.b16 %v1009, %v1008
    %v1041 = vpack.c.b16 %v1011, %v1010
    %v1042 = vpack.c.b16 %v1013, %v1012
    %v1043 = vpack.c.b16 %v1015, %v1014
    %v1044 = vpack.c.b16 %v1017, %v1016
    %v1045 = vpack.c.b16 %v1019, %v1018
    %v1046 = vpack.c.b16 %v1021, %v1020
    %v1047 = vpack.c.b16 %v1023, %v1022
    %v1048 = vpack.c.b16 %v1025, %v1024
    %v1049 = vpack.c.b16 %v1027, %v1026
    %v1050 = vpack.c.b16 %v1029, %v1028
    %v1051 = vpack.c.b16 %v1031, %v1030
    %v1052 = vpack.c.b16 %v1033, %v1032
    %v1053 = vpack.c.b16 %v1035, %v1034
    %v1054 = vpack.c.b16 %v1037, %v1036
    %v1055 = vpack.c.b16 %v1039, %v1038
    %1072 = vmatprep.subr.bf16.mxu0 0
    %1073 = vmatpush1.bf16.msra.mxu0 %v1040
    %1074 = vmatprep.subr.bf16.mxu0 0
    %1075 = vmatpush1.bf16.msra.mxu0 %v1041
    %1076 = vmatprep.subr.bf16.mxu0 0
    %1077 = vmatpush1.bf16.msra.mxu0 %v1042
    %1078 = vmatprep.subr.bf16.mxu0 0
    %1079 = vmatpush1.bf16.msra.mxu0 %v1043
    %1080 = vmatprep.subr.bf16.mxu0 0
    %1081 = vmatpush1.bf16.msra.mxu0 %v1044
    %1082 = vmatprep.subr.bf16.mxu0 0
    %1083 = vmatpush1.bf16.msra.mxu0 %v1045
    %1084 = vmatprep.subr.bf16.mxu0 0
    %1085 = vmatpush1.bf16.msra.mxu0 %v1046
    %1086 = vmatprep.subr.bf16.mxu0 0
    %1087 = vmatpush1.bf16.msra.mxu0 %v1047
    %1088 = vmatprep.subr.bf16.mxu0 0
    %1089 = vmatpush1.bf16.msra.mxu0 %v1048
    %1090 = vmatprep.subr.bf16.mxu0 0
    %1091 = vmatpush1.bf16.msra.mxu0 %v1049
    %1092 = vmatprep.subr.bf16.mxu0 0
    %1093 = vmatpush1.bf16.msra.mxu0 %v1050
    %1094 = vmatprep.subr.bf16.mxu0 0
    %1095 = vmatpush1.bf16.msra.mxu0 %v1051
    %1096 = vmatprep.subr.bf16.mxu0 0
    %1097 = vmatpush1.bf16.msra.mxu0 %v1052
    %1098 = vmatprep.subr.bf16.mxu0 0
    %1099 = vmatpush1.bf16.msra.mxu0 %v1053
    %1100 = vmatprep.subr.bf16.mxu0 0
    %1101 = vmatpush1.bf16.msra.mxu0 %v1054
    %1102 = vmatprep.subr.bf16.mxu0 0
    %1103 = vmatpush1.bf16.msra.mxu0 %v1055
    %1104 = vmatprep.mubr.bf16.mxu0 %v766
    %1105 = vmatmul.mubr.bf16.gmra.mrb[0].mxu0 %v765
    %v1106 = vpop.f32.mrb[0].mxu0
    %v1107 = vadd.f32 0.0, %v1106
    %v1108 = vpop.f32.mrb[0].mxu0
    %v1109 = vpop.f32.mrb[0].mxu0
    %v1110 = vadd.f32 0.0, %v1109
    %v1111 = vpop.f32.mrb[0].mxu0
    %1112 = vdwg.mxu0
    %v1113 = vadd.f32 %v942, %v1107
    %v1114 = vadd.f32 %v943, %v1110
    %1115 = vst [vmem:[#allocation3] sm:$0xff] %v1113
    %1116 = vst [vmem:[#allocation3 + $0x8] sm:$0xff] %v1114
    // Predicated region
    $region70: #{tpu_custom_call.1} parent=1 // pred_check
      %p1117 = pneg %p142
    $region71: #{tpu_custom_call.1} parent=1 // pred_check_branch
      %1119 = sbr.rel (%p1117) target = $region73
    $region72: #{tpu_custom_call.1} parent=1 // pred_region
      %v1120 = vld [vmem:[#allocation3] sm:$0xff]
      %v1121 = vld [vmem:[#allocation3 + $0x8] sm:$0xff]
      %v1122 = vpack.c.bf16 %v1121, %v1120
      %v1123 = vld [vmem:[#allocation2] sm:$0xff]
      %v1124 = vld [vmem:[#allocation2 + $0x8] sm:$0xff]
      %v1125 = vld [vmem:[#allocation17] sm:$0xf]
      %v1126 = vld [vmem:[#allocation17 + $0x4] sm:$0xf]
      %v1127 = vld [vmem:[#allocation17 + $0x8] sm:$0xf]
      %v1128 = vld [vmem:[#allocation17 + $0xc] sm:$0xf]
      %v1129 = vld [vmem:[#allocation17 + $0x10] sm:$0xf]
      %v1130 = vld [vmem:[#allocation17 + $0x14] sm:$0xf]
      %v1131 = vld [vmem:[#allocation17 + $0x18] sm:$0xf]
      %v1132 = vld [vmem:[#allocation17 + $0x1c] sm:$0xf]
      %v1133 = vld [vmem:[#allocation17 + $0x20] sm:$0xf]
      %v1134 = vld [vmem:[#allocation17 + $0x24] sm:$0xf]
      %v1135 = vld [vmem:[#allocation17 + $0x28] sm:$0xf]
      %v1136 = vld [vmem:[#allocation17 + $0x2c] sm:$0xf]
      %v1137 = vld [vmem:[#allocation17 + $0x30] sm:$0xf]
      %v1138 = vld [vmem:[#allocation17 + $0x34] sm:$0xf]
      %v1139 = vld [vmem:[#allocation17 + $0x38] sm:$0xf]
      %v1140 = vld [vmem:[#allocation17 + $0x3c] sm:$0xf]
      %v1157 = vunpack.c.l.b16 %v1125
      %v1158 = vunpack.c.l.b16 %v1126
      %v1159 = vunpack.c.l.b16 %v1127
      %v1160 = vunpack.c.l.b16 %v1128
      %v1161 = vunpack.c.l.b16 %v1129
      %v1162 = vunpack.c.l.b16 %v1130
      %v1163 = vunpack.c.l.b16 %v1131
      %v1164 = vunpack.c.l.b16 %v1132
      %v1165 = vunpack.c.l.b16 %v1133
      %v1166 = vunpack.c.l.b16 %v1134
      %v1167 = vunpack.c.l.b16 %v1135
      %v1168 = vunpack.c.l.b16 %v1136
      %v1169 = vunpack.c.l.b16 %v1137
      %v1170 = vunpack.c.l.b16 %v1138
      %v1171 = vunpack.c.l.b16 %v1139
      %v1172 = vunpack.c.l.b16 %v1140
      %v1173 = vpack.c.b16 %v1158, %v1157
      %v1174 = vpack.c.b16 %v1160, %v1159
      %v1175 = vpack.c.b16 %v1162, %v1161
      %v1176 = vpack.c.b16 %v1164, %v1163
      %v1177 = vpack.c.b16 %v1166, %v1165
      %v1178 = vpack.c.b16 %v1168, %v1167
      %v1179 = vpack.c.b16 %v1170, %v1169
      %v1180 = vpack.c.b16 %v1172, %v1171
      %1189 = vmatprep.subr.bf16.mxu0 0
      %1190 = vmatpush1.bf16.msra.mxu0 %v1173
      %1191 = vmatprep.subr.bf16.mxu0 0
      %1192 = vmatpush1.bf16.msra.mxu0 %v1174
      %1193 = vmatprep.subr.bf16.mxu0 0
      %1194 = vmatpush1.bf16.msra.mxu0 %v1175
      %1195 = vmatprep.subr.bf16.mxu0 0
      %1196 = vmatpush1.bf16.msra.mxu0 %v1176
      %1197 = vmatprep.subr.bf16.mxu0 0
      %1198 = vmatpush1.bf16.msra.mxu0 %v1177
      %1199 = vmatprep.subr.bf16.mxu0 0
      %1200 = vmatpush1.bf16.msra.mxu0 %v1178
      %1201 = vmatprep.subr.bf16.mxu0 0
      %1202 = vmatpush1.bf16.msra.mxu0 %v1179
      %1203 = vmatprep.subr.bf16.mxu0 0
      %1204 = vmatpush1.bf16.msra.mxu0 %v1180
      %1205 = vmatprep.subr.bf16.mxu0 0
      %1206 = vmatpush1.bf16.msra.mxu0 0
      %1207 = vmatprep.subr.bf16.mxu0 0
      %1208 = vmatpush1.bf16.msra.mxu0 0
      %1209 = vmatprep.subr.bf16.mxu0 0
      %1210 = vmatpush1.bf16.msra.mxu0 0
      %1211 = vmatprep.subr.bf16.mxu0 0
      %1212 = vmatpush1.bf16.msra.mxu0 0
      %1213 = vmatprep.subr.bf16.mxu0 0
      %1214 = vmatpush1.bf16.msra.mxu0 0
      %1215 = vmatprep.subr.bf16.mxu0 0
      %1216 = vmatpush1.bf16.msra.mxu0 0
      %1217 = vmatprep.subr.bf16.mxu0 0
      %1218 = vmatpush1.bf16.msra.mxu0 0
      %1219 = vmatprep.subr.bf16.mxu0 0
      %1220 = vmatpush1.bf16.msra.mxu0 0
      %1221 = vmatprep.mubr.bf16.mxu0 0
      %1222 = vmatmul.mubr.bf16.gmra.mrb[0].mxu0 %v1122
      %v1223 = vpop.f32.mrb[0].mxu0
      %v1224 = vadd.f32 0.0, %v1223
      %v1225 = vpop.f32.mrb[0].mxu0
      %v1226 = vpop.f32.mrb[0].mxu0
      %v1227 = vadd.f32 0.0, %v1226
      %v1228 = vpop.f32.mrb[0].mxu0
      %1229 = vdwg.mxu0
      %v1230 = vadd.f32 %v1123, %v1224
      %v1231 = vadd.f32 %v1124, %v1227
      %v1232 = vpack.c.bf16 %v1231, %v1230
      %v1234 = vunpack.c.l.b16 %v1232
      %v1235 = vunpack.c.h.b16 %v1232
      %v1236 = vpack.c.b16 %v1234, %v1234
      %v1237 = vpack.c.b16 %v1235, %v1235
      %vm1240 = vcmask 519168
      %1241 = vst.msk [vmem:[#allocation19] sm:$0xf] %vm1240, %v1236
      %1242 = vst.msk [vmem:[#allocation19 + $0x4] sm:$0xf] %vm1240, %v1237
    $region73: #{tpu_custom_call.1} parent=1 // pred_fallthru
      _
    // Predicated region
    $region74: #{tpu_custom_call.1} parent=1 // pred_check
      _
    $region75: #{tpu_custom_call.1} parent=1 // pred_check_branch
      %1244 = sbr.rel (0) target = $region77
    $region76: #{tpu_custom_call.1} parent=1 // pred_region
      %s1246 = ssub.s32 128, 128
      %1247 = vsyncadd [#allocation7], %s1246
      %s1248 = sshll.u32 [#allocation19], 4
      %s1249 = int_to_ptr.vmem [resolvable:$true] %s1248
      %1254 = dma.vmem_to_hbm [thread:$0]  %s1249, 128, %s8, [#allocation7], 64, 64, 4
    $region77: #{tpu_custom_call.1} parent=1 // pred_fallthru
      _
    // Predicated region
    $region78: #{tpu_custom_call.1} parent=1 // pred_check
      _
    $region79: #{tpu_custom_call.1} parent=1 // pred_check_branch
      %1256 = sbr.rel (0) target = $region81
    $region80: #{tpu_custom_call.1} parent=1 // pred_region
      %1257 = dma.done [#allocation7], 128
    $region81: #{tpu_custom_call.1} parent=1 // pred_fallthru
      _
    %1258 = vsyncpa [#allocation6], 1
    %1259 = vsyncpa [#allocation9], 1
    %1260 = vsyncpa [#allocation12], 1
    %1261 = vsyncpa [#allocation15], 1
    %1262 = vsyncpa [#allocation18], 1
    %1263 = vsyncpa [#allocation7], 1

</llo_original>
